<compile_context>
chip_gen: v7x
topology: tpu7x:2x2x1
jax: 0.10.0
libtpu: 0.0.40
codegen_flags: <defaults>
</compile_context>

<pallas_src>
import functools

import jax
import jax.numpy as jnp
from jax import lax
from jax.experimental import pallas as pl
from jax.experimental.pallas import tpu as pltpu

KERNEL_SIZE = 5  # odd kernel => output length == input length (as in PyTorch)


def _decomp_kernel(x_ref, res_ref, mean_ref, *, kernel_size):
    """Blocks are (BT, L, CT); L on sublanes, CT on lanes."""
    pad = (kernel_size - 1) // 2
    L = x_ref.shape[1]

    xv = x_ref[...].astype(jnp.float32)  # read once, accumulate in f32
    # Hoisted broadcasts of the clamped edge rows (replicate padding values).
    first_b = jnp.broadcast_to(xv[:, 0:1, :], xv.shape)
    last_b = jnp.broadcast_to(xv[:, L - 1:L, :], xv.shape)
    row = lax.broadcasted_iota(jnp.int32, xv.shape, 1)

    acc = xv
    for s in range(1, pad + 1):
        # Look-ahead: want x[min(t + s, L - 1)] at output row t.
        fwd = pltpu.roll(xv, shift=(-s) % L, axis=1)
        acc = acc + jnp.where(row >= L - s, last_b, fwd)
        # Look-back: want x[max(t - s, 0)] at output row t.
        bwd = pltpu.roll(xv, shift=s % L, axis=1)
        acc = acc + jnp.where(row < s, first_b, bwd)

    mean = acc * (1.0 / kernel_size)
    # Each output written exactly once (keeps the single vst slot on v5e happy).
    mean_ref[...] = mean.astype(mean_ref.dtype)
    res_ref[...] = (xv - mean).astype(res_ref.dtype)


def _vmem_capacity_bytes():
    try:
        info = pltpu.get_tpu_info()
        cap = getattr(info, "vmem_capacity_bytes", None)
        if cap:
            return int(cap)
    except Exception:
        pass
    return 128 * 1024 * 1024  # conservative fallback (budget below stays tiny)


def _pick_tiles(B, L, C, itemsize, budget_bytes):
    """Pick (bt, ct) so the per-grid-step VMEM footprint stays under budget.

    Footprint per element of a block (conservative):
      2x double-buffered input + 2 outputs x2 double-buffered (6*itemsize)
      + ~6 f32-sized register/VMEM temporaries (xv, edge broadcasts, rolls, acc).
    """
    per_elem = 6 * itemsize + 6 * 4
    max_elems = max(budget_bytes // per_elem, 8 * 128)

    # Channel (lane) tile: largest lane-aligned divisor of C that fits with bt=1.
    if C % 128 == 0:
        ct = 128
        while (ct * 2) <= C and C % (ct * 2) == 0 and L * (ct * 2) <= max_elems:
            ct *= 2
    else:
        # C < 128 (or not lane-aligned): take the whole channel axis.
        # TODO(synk): a lane-dense relayout (putting L on lanes / folding axes)
        # would avoid masked partial stores here, but costs an extra HBM
        # transpose pass in the wrapper; kept as-is for the (B, L, C) contract.
        ct = C

    # Batch tile: largest divisor of B keeping the block within budget.
    # TODO(synk): very long L with tiny B*C may still exceed the budget; tiling
    # L would need halo handling for the window and is not implemented.
    bt = 1
    for d in range(B, 0, -1):
        if B % d == 0 and d * L * ct <= max_elems:
            bt = d
            break

    # Keep >= 2 grid steps when possible so both v7x TensorCores get work
    # (harmless on single-TC v5e/v6e).
    if (B // bt) * (C // ct) < 2:
        if bt > 1:
            for d in range(bt - 1, 0, -1):
                if B % d == 0:
                    bt = d
                    break
        elif ct > 128 and C % (ct // 2) == 0 and (ct // 2) % 128 == 0:
            ct //= 2
    return bt, ct


def series_decomp(x, kernel_size=KERNEL_SIZE, block=None):
    """x: (B, L, C). Returns (res, moving_mean), both (B, L, C)."""
    assert kernel_size % 2 == 1, "kernel_size must be odd (output length == L)"
    B, L, C = x.shape
    itemsize = jnp.dtype(x.dtype).itemsize

    cap = _vmem_capacity_bytes()
    budget = min(cap // 8, 12 * 1024 * 1024)  # per-step footprint target
    if block is None:
        bt, ct = _pick_tiles(B, L, C, itemsize, budget)
    else:
        bt, ct = block
    assert B % bt == 0 and C % ct == 0

    footprint = bt * L * ct * (6 * itemsize + 6 * 4)
    # Explicit scoped-VMEM limit with headroom; never the whole physical VMEM.
    vmem_limit = int(min(cap // 2, max(2 * footprint, 16 * 1024 * 1024)))

    kernel = functools.partial(_decomp_kernel, kernel_size=kernel_size)
    spec = pl.BlockSpec((bt, L, ct), lambda b, c: (b, 0, c))

    res, mean = pl.pallas_call(
        kernel,
        out_shape=(
            jax.ShapeDtypeStruct((B, L, C), x.dtype),
            jax.ShapeDtypeStruct((B, L, C), x.dtype),
        ),
        grid=(B // bt, C // ct),
        in_specs=[spec],
        out_specs=(spec, spec),
        compiler_params=pltpu.CompilerParams(
            dimension_semantics=("parallel", "parallel"),
            vmem_limit_bytes=vmem_limit,
        ),
    )(x)
    return res, mean


def _reference(x, kernel_size=KERNEL_SIZE):
    """Pure-JAX reference mirroring the PyTorch module."""
    pad = (kernel_size - 1) // 2
    front = jnp.repeat(x[:, :1, :], pad, axis=1)
    end = jnp.repeat(x[:, -1:, :], pad, axis=1)
    xpad = jnp.concatenate([front, x, end], axis=1)
    L = x.shape[1]
    mean = jnp.mean(
        jnp.stack([xpad[:, i:i + L, :] for i in range(kernel_size)], axis=0),
        axis=0,
    )
    return x - mean, mean


if __name__ == "__main__":
    key = jax.random.PRNGKey(0)

    # Small demo shape matching the module's (B, L, C) layout (C < 128 path).
    B, L, C = 2, 8, 32
    x = jax.random.normal(key, (B, L, C), dtype=jnp.float32)
    res, mean = series_decomp(x, KERNEL_SIZE)
    jax.block_until_ready((res, mean))
    res_ref, mean_ref = _reference(x, KERNEL_SIZE)
    assert jnp.allclose(res, res_ref, atol=1e-5, rtol=1e-5)
    assert jnp.allclose(mean, mean_ref, atol=1e-5, rtol=1e-5)
    assert jnp.allclose(res + mean, x, atol=1e-5, rtol=1e-5)

    # Lane-aligned channel count, exercising the C-tiled grid path.
    B2, L2, C2 = 2, 16, 256
    x2 = jax.random.normal(jax.random.PRNGKey(1), (B2, L2, C2), dtype=jnp.float32)
    res2, mean2 = series_decomp(x2, KERNEL_SIZE, block=(1, 128))
    jax.block_until_ready((res2, mean2))
    res2_ref, mean2_ref = _reference(x2, KERNEL_SIZE)
    assert jnp.allclose(res2, res2_ref, atol=1e-5, rtol=1e-5)
    assert jnp.allclose(mean2, mean2_ref, atol=1e-5, rtol=1e-5)

    # bf16 I/O path (accumulation stays in f32 inside the kernel).
    B3, L3, C3 = 2, 24, 128
    x3 = jax.random.normal(jax.random.PRNGKey(2), (B3, L3, C3), dtype=jnp.bfloat16)
    res3, mean3 = series_decomp(x3, KERNEL_SIZE)
    jax.block_until_ready((res3, mean3))
    res3_ref, mean3_ref = _reference(x3.astype(jnp.float32), KERNEL_SIZE)
    assert jnp.allclose(res3.astype(jnp.float32), res3_ref, atol=5e-2, rtol=5e-2)
    assert jnp.allclose(mean3.astype(jnp.float32), mean3_ref, atol=5e-2, rtol=5e-2)

    print("KERNEL_OK")
</pallas_src>

<mosaic_0001>
module attributes {stable_mosaic.version = 11 : i64} {
  func.func @_decomp_kernel(%arg0: i32, %arg1: i32, %arg2: memref<1x8x32xf32, #tpu.memory_space<vmem>>, %arg3: memref<1x8x32xf32, #tpu.memory_space<vmem>>, %arg4: memref<1x8x32xf32, #tpu.memory_space<vmem>>) attributes {dimension_semantics = [#tpu.dimension_semantics<parallel>, #tpu.dimension_semantics<parallel>], iteration_bounds = array<i64: 2, 1>, scalar_prefetch = 0 : i64, scratch_operands = 0 : i64, tpu.core_type = #tpu.core_type<tc>, window_params = [{transform_indices = @transform_0, window_bounds = array<i64: 1, 8, 32>}, {transform_indices = @transform_1, window_bounds = array<i64: 1, 8, 32>}, {transform_indices = @transform_2, window_bounds = array<i64: 1, 8, 32>}]} {
    %c0 = arith.constant 0 : index
    %c0_0 = arith.constant 0 : index
    %c0_1 = arith.constant 0 : index
    %0 = vector.load %arg2[%c0, %c0_0, %c0_1] : memref<1x8x32xf32, #tpu.memory_space<vmem>>, vector<1x8x32xf32>
    %1 = vector.extract_strided_slice %0 {offsets = [0, 0, 0], sizes = [1, 1, 32], strides = [1, 1, 1]} : vector<1x8x32xf32> to vector<1x1x32xf32>
    %2 = vector.shape_cast %1 : vector<1x1x32xf32> to vector<1x1x32xf32>
    %3 = vector.broadcast %2 : vector<1x1x32xf32> to vector<1x8x32xf32>
    %4 = vector.extract_strided_slice %0 {offsets = [0, 7, 0], sizes = [1, 1, 32], strides = [1, 1, 1]} : vector<1x8x32xf32> to vector<1x1x32xf32>
    %5 = vector.shape_cast %4 : vector<1x1x32xf32> to vector<1x1x32xf32>
    %6 = vector.broadcast %5 : vector<1x1x32xf32> to vector<1x8x32xf32>
    %7 = tpu.iota {dimensions = array<i32: 1>} : vector<1x8x32xi32>
    %c7_i32 = arith.constant 7 : i32
    %8 = tpu.dynamic_rotate %0 by %c7_i32 dim 1 : vector<1x8x32xf32>, i32 -> vector<1x8x32xf32>
    %c7_i32_2 = arith.constant 7 : i32
    %9 = vector.broadcast %c7_i32_2 : i32 to vector<1x8x32xi32>
    %10 = arith.cmpi sge, %7, %9 : vector<1x8x32xi32>
    %11 = arith.select %10, %6, %8 : vector<1x8x32xi1>, vector<1x8x32xf32>
    %12 = arith.addf %0, %11 : vector<1x8x32xf32>
    %c1_i32 = arith.constant 1 : i32
    %13 = tpu.dynamic_rotate %0 by %c1_i32 dim 1 : vector<1x8x32xf32>, i32 -> vector<1x8x32xf32>
    %c1_i32_3 = arith.constant 1 : i32
    %14 = vector.broadcast %c1_i32_3 : i32 to vector<1x8x32xi32>
    %15 = arith.cmpi slt, %7, %14 : vector<1x8x32xi32>
    %16 = arith.select %15, %3, %13 : vector<1x8x32xi1>, vector<1x8x32xf32>
    %17 = arith.addf %12, %16 : vector<1x8x32xf32>
    %c6_i32 = arith.constant 6 : i32
    %18 = tpu.dynamic_rotate %0 by %c6_i32 dim 1 : vector<1x8x32xf32>, i32 -> vector<1x8x32xf32>
    %c6_i32_4 = arith.constant 6 : i32
    %19 = vector.broadcast %c6_i32_4 : i32 to vector<1x8x32xi32>
    %20 = arith.cmpi sge, %7, %19 : vector<1x8x32xi32>
    %21 = arith.select %20, %6, %18 : vector<1x8x32xi1>, vector<1x8x32xf32>
    %22 = arith.addf %17, %21 : vector<1x8x32xf32>
    %c2_i32 = arith.constant 2 : i32
    %23 = tpu.dynamic_rotate %0 by %c2_i32 dim 1 : vector<1x8x32xf32>, i32 -> vector<1x8x32xf32>
    %c2_i32_5 = arith.constant 2 : i32
    %24 = vector.broadcast %c2_i32_5 : i32 to vector<1x8x32xi32>
    %25 = arith.cmpi slt, %7, %24 : vector<1x8x32xi32>
    %26 = arith.select %25, %3, %23 : vector<1x8x32xi1>, vector<1x8x32xf32>
    %27 = arith.addf %22, %26 : vector<1x8x32xf32>
    %cst = arith.constant 2.000000e-01 : f32
    %28 = vector.broadcast %cst : f32 to vector<1x8x32xf32>
    %29 = arith.mulf %27, %28 : vector<1x8x32xf32>
    %c0_6 = arith.constant 0 : index
    %c0_7 = arith.constant 0 : index
    %c0_8 = arith.constant 0 : index
    %30 = vector.load %arg4[%c0_6, %c0_7, %c0_8] : memref<1x8x32xf32, #tpu.memory_space<vmem>>, vector<1x8x32xf32>
    tpu.vector_store %arg4[%c0_6, %c0_7, %c0_8], %29 {strides = array<i32>} : memref<1x8x32xf32, #tpu.memory_space<vmem>>, vector<1x8x32xf32>,
    %31 = arith.subf %0, %29 : vector<1x8x32xf32>
    %c0_9 = arith.constant 0 : index
    %c0_10 = arith.constant 0 : index
    %c0_11 = arith.constant 0 : index
    %32 = vector.load %arg3[%c0_9, %c0_10, %c0_11] : memref<1x8x32xf32, #tpu.memory_space<vmem>>, vector<1x8x32xf32>
    tpu.vector_store %arg3[%c0_9, %c0_10, %c0_11], %31 {strides = array<i32>} : memref<1x8x32xf32, #tpu.memory_space<vmem>>, vector<1x8x32xf32>,
    return
  }
  func.func @transform_0(%arg0: i32, %arg1: i32) -> (i32, i32, i32) {
    %c0_i32 = arith.constant 0 : i32
    %c0_i32_0 = arith.constant 0 : i32
    return %arg0, %c0_i32, %arg1 : i32, i32, i32
  }
  func.func @transform_1(%arg0: i32, %arg1: i32) -> (i32, i32, i32) {
    %c0_i32 = arith.constant 0 : i32
    %c0_i32_0 = arith.constant 0 : i32
    return %arg0, %c0_i32, %arg1 : i32, i32, i32
  }
  func.func @transform_2(%arg0: i32, %arg1: i32) -> (i32, i32, i32) {
    %c0_i32 = arith.constant 0 : i32
    %c0_i32_0 = arith.constant 0 : i32
    return %arg0, %c0_i32, %arg1 : i32, i32, i32
  }
}

</mosaic_0001>

<llo_original>
// kernel: tpu_custom_call.1
$region0: #{tpu_custom_call.1}
  #allocation0 [shape = 'u32[]', space=smem, size = 0x4, offset = 0x4, fixed_abs, tag = 'smem constant byte address 0x4 - core index']
  #allocation1 [shape = 'u32[144,128]{1,0:T(1,128)}', space=vmem, size = 0x12000, scoped, tag = 'internal scratch']
  %s0 = inlined_call_operand.hbm [shape: f32[2,8,32], index: 0, kind: input, shape index: {}]
  %s1 = inlined_call_operand.hbm [shape: f32[2,8,32], index: 1, kind: output, shape index: {0}]
  %s2 = inlined_call_operand.hbm [shape: f32[2,8,32], index: 2, kind: output, shape index: {1}]
  %3 = xla_tuple %s1, %s2
  %s4 = sld [smem:[#allocation0]]
  $region49: #{tpu_custom_call.1} parent=0
    _
  %s6 = ssub.s32 1, %s4
  %s7 = scalar_select 0, %s6, %s4
  $region1: #{tpu_custom_call.1} parent=0
    #allocation2 [shape = 'u8[8192]{0}', space=vmem, size = 0x2000, scoped, tag = 'input window, operand 0']
    #allocation3 [shape = 's32[2]{0}', space=sflag, size = 0x8, scoped, tag = 'scoped memory for tpu_custom_call.1']
    #allocation4 [shape = 's32[2]{0}', space=sflag, size = 0x8, scoped, tag = 'scoped memory for tpu_custom_call.1']
    #allocation5 [shape = 'u8[8192]{0}', space=vmem, size = 0x2000, scoped, tag = 'output window, operand 0']
    #allocation6 [shape = 'u8[8192]{0}', space=vmem, size = 0x2000, scoped, tag = 'output window, operand 1']
    #allocation7 [shape = 's32[2]{0}', space=sflag, size = 0x8, scoped, tag = 'scoped memory for tpu_custom_call.1']
    %8 = vsyncpa [#allocation3], 0
    %s9 = scalar_lea.sflag [#allocation3], 1
    %10 = vsyncpa %s9, 0
    %11 = vsyncpa [#allocation4], 0
    %s12 = scalar_lea.sflag [#allocation4], 1
    %13 = vsyncpa %s12, 0
    %14 = vsyncpa [#allocation7], 0
    %s15 = scalar_lea.sflag [#allocation7], 1
    %16 = vsyncpa %s15, 0
    loop: start=0, step=1, limit=4
    $region2: #{tpu_custom_call.1} parent=1 // loop_pre_header
      _
    $region3: #{tpu_custom_call.1} parent=1 // loop_header
      %s18 = sphi 0, %s22
      %p19 = scmp.ge.s32.totalorder %s18, 4
      %s25 = sphi 0, %s37
      %s26 = sphi 0, %s33
      %s27 = sphi 0, %s25
      %s28 = sphi 0, %s26
      %s29 = sphi 0, %s27
      %s30 = sphi 0, %s28
      %s42 = sphi 0, %s44
      %s45 = sphi 0, %s42
      %s46 = sphi 0, %s45
      %s62 = sphi 0, %s46
      %s70 = sphi 0, %s72
      %s73 = sphi 0, %s70
      %s74 = sphi 0, %s73
      %s90 = sphi 0, %s74
      %s98 = sphi 0, %s100
      %s101 = sphi 0, %s98
      %s102 = sphi 0, %s101
      %s118 = sphi 0, %s102
    $region4: #{tpu_custom_call.1} parent=1 // loop_header_branch
      %21 = sbr.rel (%p19) target = $region8
    $region5: #{tpu_custom_call.1} parent=1 // loop_body
      %s23 = ssub.s32 %s18, 1
      %s24 = ssub.s32 %s18, 2
      %s31 = sadd.s32 1, %s26
      %p32 = scmp.ge.s32.totalorder %s31, 1
      %s33 = scalar_select %p32, 0, %s31
      %s34 = sadd.s32 1, %s25
      %s35 = scalar_select %p32, %s34, %s25
      %p36 = scmp.ge.s32.totalorder %s35, 2
      %s37 = scalar_select %p36, 0, %s35
      %s38 = ssub.s32 %s25, %s37
      %s39 = ssub.s32 %s26, %s33
      %s40 = sor.u32 %s38, %s39
      %p41 = scmp.eq.s32.totalorder %s40, 0
      %s43 = sadd.s32 %s42, 1
      %s44 = scalar_select %p41, %s42, %s43
      %p47 = pneg %p41
      %p48 = scmp.eq.s32.totalorder %s18, 1
      %p49 = por %p47, %p48
      %p50 = scmp.ne.s32.totalorder %s42, %s45
      %p51 = scmp.eq.s32.totalorder %s18, 0
      %p52 = por %p50, %p51
      %p53 = scmp.ne.s32.totalorder %s42, %s45
      %p54 = scmp.eq.s32.totalorder %s23, 1
      %p55 = por %p53, %p54
      %p56 = scmp.ne.s32.totalorder %s45, %s46
      %p57 = scmp.eq.s32.totalorder %s23, 0
      %p58 = por %p56, %p57
      %p59 = scmp.ne.s32.totalorder %s45, %s46
      %p60 = scmp.eq.s32.totalorder %s24, 1
      %p61 = por %p59, %p60
      %p63 = scmp.ne.s32.totalorder %s46, %s62
      %p64 = scmp.eq.s32.totalorder %s24, 0
      %p65 = por %p63, %p64
      %s66 = ssub.s32 %s25, %s37
      %s67 = ssub.s32 %s26, %s33
      %s68 = sor.u32 %s66, %s67
      %p69 = scmp.eq.s32.totalorder %s68, 0
      %s71 = sadd.s32 %s70, 1
      %s72 = scalar_select %p69, %s70, %s71
      %p75 = pneg %p69
      %p76 = scmp.eq.s32.totalorder %s18, 1
      %p77 = por %p75, %p76
      %p78 = scmp.ne.s32.totalorder %s70, %s73
      %p79 = scmp.eq.s32.totalorder %s18, 0
      %p80 = por %p78, %p79
      %p81 = scmp.ne.s32.totalorder %s70, %s73
      %p82 = scmp.eq.s32.totalorder %s23, 1
      %p83 = por %p81, %p82
      %p84 = scmp.ne.s32.totalorder %s73, %s74
      %p85 = scmp.eq.s32.totalorder %s23, 0
      %p86 = por %p84, %p85
      %p87 = scmp.ne.s32.totalorder %s73, %s74
      %p88 = scmp.eq.s32.totalorder %s24, 1
      %p89 = por %p87, %p88
      %p91 = scmp.ne.s32.totalorder %s74, %s90
      %p92 = scmp.eq.s32.totalorder %s24, 0
      %p93 = por %p91, %p92
      %s94 = ssub.s32 %s25, %s37
      %s95 = ssub.s32 %s26, %s33
      %s96 = sor.u32 %s94, %s95
      %p97 = scmp.eq.s32.totalorder %s96, 0
      %s99 = sadd.s32 %s98, 1
      %s100 = scalar_select %p97, %s98, %s99
      %p103 = pneg %p97
      %p104 = scmp.eq.s32.totalorder %s18, 1
      %p105 = por %p103, %p104
      %p106 = scmp.ne.s32.totalorder %s98, %s101
      %p107 = scmp.eq.s32.totalorder %s18, 0
      %p108 = por %p106, %p107
      %p109 = scmp.ne.s32.totalorder %s98, %s101
      %p110 = scmp.eq.s32.totalorder %s23, 1
      %p111 = por %p109, %p110
      %p112 = scmp.ne.s32.totalorder %s101, %s102
      %p113 = scmp.eq.s32.totalorder %s23, 0
      %p114 = por %p112, %p113
      %p115 = scmp.ne.s32.totalorder %s101, %s102
      %p116 = scmp.eq.s32.totalorder %s24, 1
      %p117 = por %p115, %p116
      %p119 = scmp.ne.s32.totalorder %s102, %s118
      %p120 = scmp.eq.s32.totalorder %s24, 0
      %p121 = por %p119, %p120
      %p122 = scmp.le.s32.totalorder 1, %s18
      %p123 = scmp.lt.s32.totalorder %s18, 3
      %p124 = pnand %p122, %p123
      %p125 = pneg %p124
      // Predicated region
      $region9: #{tpu_custom_call.1} parent=5 // pred_check
        _
      $region10: #{tpu_custom_call.1} parent=5 // pred_check_branch
        %127 = sbr.rel (%p124) target = $region12
      $region11: #{tpu_custom_call.1} parent=5 // pred_region
        %s128 = ssub.s32 %s18, 1
      $region12: #{tpu_custom_call.1} parent=5 // pred_fallthru
        _
      %p129 = scmp.lt.s32.totalorder %s18, 2
      // Predicated region
      $region13: #{tpu_custom_call.1} parent=5 // pred_check
        %p130 = pneg %p129
      $region14: #{tpu_custom_call.1} parent=5 // pred_check_branch
        %132 = sbr.rel (%p130) target = $region16
      $region15: #{tpu_custom_call.1} parent=5 // pred_region
        // Predicated region
        $region17: #{tpu_custom_call.1} parent=15 // pred_check
          %p133 = pneg %p52
        $region18: #{tpu_custom_call.1} parent=15 // pred_check_branch
          %135 = sbr.rel (%p133) target = $region20
        $region19: #{tpu_custom_call.1} parent=15 // pred_region
          %s136 = sand.u32 %s42, 1
          %s137 = scalar_lea.sflag [#allocation3], %s136
          %s138 = sand.u32 %s42, 1
          %s139 = smul.addr %s138, 8
          %s140 = scalar_lea.vmem [#allocation2], %s139
          %s142 = ssub.s32 128, 128
          %143 = vsyncadd %s137, %s142
          %s144 = sadd.s32 %s26, %s25
          %s145 = smul.addr %s144, 128
          %s146 = scalar_lea.hbm %s0, %s145
          %s148 = sshll.u32 %s140, 4
          %s149 = int_to_ptr.vmem [resolvable:$true] %s148
          %151 = dma.hbm_to_vmem [thread:$0]  %s146, 128, %s149, %s137
        $region20: #{tpu_custom_call.1} parent=15 // pred_fallthru
          _
      $region16: #{tpu_custom_call.1} parent=5 // pred_fallthru
        _
      %p152 = scmp.le.s32.totalorder 1, %s18
      %p153 = scmp.lt.s32.totalorder %s18, 3
      %p154 = pnand %p152, %p153
      %p155 = pneg %p154
      // Predicated region
      $region21: #{tpu_custom_call.1} parent=5 // pred_check
        _
      $region22: #{tpu_custom_call.1} parent=5 // pred_check_branch
        %157 = sbr.rel (%p154) target = $region24
      $region23: #{tpu_custom_call.1} parent=5 // pred_region
        %s158 = ssub.s32 %s18, 1
        %s159 = sand.u32 %s45, 1
        %s160 = scalar_lea.sflag [#allocation3], %s159
        %s161 = sand.u32 %s45, 1
        %s162 = smul.addr %s161, 8
        %s163 = scalar_lea.vmem [#allocation2], %s162
        // Predicated region
        $region25: #{tpu_custom_call.1} parent=23 // pred_check
          %p164 = pneg %p58
        $region26: #{tpu_custom_call.1} parent=23 // pred_check_branch
          %166 = sbr.rel (%p164) target = $region28
        $region27: #{tpu_custom_call.1} parent=23 // pred_region
          %167 = dma.done %s160, 128
        $region28: #{tpu_custom_call.1} parent=23 // pred_fallthru
          _
        %s168 = sand.u32 %s45, 1
        %s169 = scalar_lea.sflag [#allocation3], %s168
        %s170 = sand.u32 %s45, 1
        %s171 = smul.addr %s170, 8
        %s172 = scalar_lea.vmem [#allocation2], %s171
        %p173 = pneg %p58
        %p174 = pneg %p55
        %p175 = pneg %p86
        %p176 = pneg %p83
        %s177 = sand.u32 %s73, 1
        %s178 = scalar_lea.sflag [#allocation4], %s177
        %s179 = sand.u32 %s73, 1
        %s180 = smul.addr %s179, 8
        %s181 = scalar_lea.vmem [#allocation5], %s180
        %p182 = pneg %p114
        %p183 = pneg %p111
        %s184 = sand.u32 %s101, 1
        %s185 = scalar_lea.sflag [#allocation7], %s184
        %s186 = sand.u32 %s101, 1
        %s187 = smul.addr %s186, 8
        %s188 = scalar_lea.vmem [#allocation6], %s187
        %v189 = vld [vmem:[%s163] sm:$0xff]
        %v190 = vlaneseq
        %v191 = vshrl.u32 %v190, 7
        %v192 = vsub.s32 0, %v191
        %v193 = vrot.slane %v189, %v192
        %v194 = vlaneseq
        %v195 = vshrl.u32 %v194, 7
        %v196 = vsub.s32 7, %v195
        %v197 = vrot.slane %v189, %v196
        %v198 = vlaneseq
        %v199 = vshrl.u32 %v198, 7
        %v200 = vrot.slane %v189, 1
        %vm201 = vcmp.ge.s32.totalorder %v199, 7
        %v202 = vsel %vm201, %v197, %v200
        %v203 = vadd.f32 %v189, %v202
        %v204 = vrot.slane %v189, 7
        %vm205 = vcmp.lt.s32.totalorder %v199, 1
        %v206 = vsel %vm205, %v193, %v204
        %v207 = vadd.f32 %v203, %v206
        %v208 = vrot.slane %v189, 2
        %vm209 = vcmp.ge.s32.totalorder %v199, 6
        %v210 = vsel %vm209, %v197, %v208
        %v211 = vadd.f32 %v207, %v210
        %v212 = vrot.slane %v189, 6
        %vm213 = vcmp.lt.s32.totalorder %v199, 2
        %v214 = vsel %vm213, %v193, %v212
        %v215 = vadd.f32 %v211, %v214
        %v216 = vmul.f32 %v215, 0.2
        %vm217 = vcmask 261120
        %218 = vst.msk [vmem:[%s188] sm:$0xff] %vm217, %v216
        %v219 = vsub.f32 %v189, %v216
        %220 = vst.msk [vmem:[%s181] sm:$0xff] %vm217, %v219
        %s221 = sand.u32 %s73, 1
        %s222 = scalar_lea.sflag [#allocation4], %s221
        %s223 = sand.u32 %s73, 1
        %s224 = smul.addr %s223, 8
        %s225 = scalar_lea.vmem [#allocation5], %s224
        %s226 = sand.u32 %s101, 1
        %s227 = scalar_lea.sflag [#allocation7], %s226
        %s228 = sand.u32 %s101, 1
        %s229 = smul.addr %s228, 8
        %s230 = scalar_lea.vmem [#allocation6], %s229
        // Predicated region
        $region29: #{tpu_custom_call.1} parent=23 // pred_check
          %p231 = pneg %p83
        $region30: #{tpu_custom_call.1} parent=23 // pred_check_branch
          %233 = sbr.rel (%p231) target = $region32
        $region31: #{tpu_custom_call.1} parent=23 // pred_region
          %s235 = ssub.s32 128, 128
          %236 = vsyncadd %s222, %s235
          %s237 = sadd.s32 %s28, %s27
          %s238 = smul.addr %s237, 128
          %s239 = scalar_lea.hbm %s1, %s238
          %s241 = sshll.u32 %s225, 4
          %s242 = int_to_ptr.vmem [resolvable:$true] %s241
          %244 = dma.vmem_to_hbm [thread:$0]  %s242, 128, %s239, %s222
        $region32: #{tpu_custom_call.1} parent=23 // pred_fallthru
          _
        // Predicated region
        $region33: #{tpu_custom_call.1} parent=23 // pred_check
          %p245 = pneg %p111
        $region34: #{tpu_custom_call.1} parent=23 // pred_check_branch
          %247 = sbr.rel (%p245) target = $region36
        $region35: #{tpu_custom_call.1} parent=23 // pred_region
          %s249 = ssub.s32 128, 128
          %250 = vsyncadd %s227, %s249
          %s251 = sadd.s32 %s28, %s27
          %s252 = smul.addr %s251, 128
          %s253 = scalar_lea.hbm %s2, %s252
          %s255 = sshll.u32 %s230, 4
          %s256 = int_to_ptr.vmem [resolvable:$true] %s255
          %258 = dma.vmem_to_hbm [thread:$0]  %s256, 128, %s253, %s227
        $region36: #{tpu_custom_call.1} parent=23 // pred_fallthru
          _
      $region24: #{tpu_custom_call.1} parent=5 // pred_fallthru
        _
      %p259 = scmp.le.s32.totalorder 2, %s18
      // Predicated region
      $region37: #{tpu_custom_call.1} parent=5 // pred_check
        %p260 = pneg %p259
      $region38: #{tpu_custom_call.1} parent=5 // pred_check_branch
        %262 = sbr.rel (%p260) target = $region40
      $region39: #{tpu_custom_call.1} parent=5 // pred_region
        %s263 = ssub.s32 %s18, 2
        // Predicated region
        $region41: #{tpu_custom_call.1} parent=39 // pred_check
          %p264 = pneg %p89
        $region42: #{tpu_custom_call.1} parent=39 // pred_check_branch
          %266 = sbr.rel (%p264) target = $region44
        $region43: #{tpu_custom_call.1} parent=39 // pred_region
          %s267 = sand.u32 %s74, 1
          %s268 = scalar_lea.sflag [#allocation4], %s267
          %s269 = sand.u32 %s74, 1
          %s270 = smul.addr %s269, 8
          %s271 = scalar_lea.vmem [#allocation5], %s270
          %272 = dma.done %s268, 128
        $region44: #{tpu_custom_call.1} parent=39 // pred_fallthru
          _
        // Predicated region
        $region45: #{tpu_custom_call.1} parent=39 // pred_check
          %p273 = pneg %p117
        $region46: #{tpu_custom_call.1} parent=39 // pred_check_branch
          %275 = sbr.rel (%p273) target = $region48
        $region47: #{tpu_custom_call.1} parent=39 // pred_region
          %s276 = sand.u32 %s102, 1
          %s277 = scalar_lea.sflag [#allocation7], %s276
          %s278 = sand.u32 %s102, 1
          %s279 = smul.addr %s278, 8
          %s280 = scalar_lea.vmem [#allocation6], %s279
          %281 = dma.done %s277, 128
        $region48: #{tpu_custom_call.1} parent=39 // pred_fallthru
          _
      $region40: #{tpu_custom_call.1} parent=5 // pred_fallthru
        _
    $region6: #{tpu_custom_call.1} parent=1 // loop_footer
      %s22 = sadd.s32 1, %s18
    $region7: #{tpu_custom_call.1} parent=1 // loop_footer_branch
      %17 = sbr.rel target = $region3
    $region8: #{tpu_custom_call.1} parent=1 // loop_exit
      _
    %282 = vsyncpa [#allocation3], 1
    %s283 = scalar_lea.sflag [#allocation3], 1
    %284 = vsyncpa %s283, 1
    %285 = vsyncpa [#allocation4], 1
    %s286 = scalar_lea.sflag [#allocation4], 1
    %287 = vsyncpa %s286, 1
    %288 = vsyncpa [#allocation7], 1
    %s289 = scalar_lea.sflag [#allocation7], 1
    %290 = vsyncpa %s289, 1

</llo_original>
